<compile_context>
chip_gen: v5e
topology: v5e:2x2
jax: 0.10.0
libtpu: 0.0.40
codegen_flags: <defaults>
</compile_context>

<pallas_src>
import functools

import jax
import jax.numpy as jnp
from jax.experimental import pallas as pl
from jax.experimental.pallas import tpu as pltpu


def fc_relu_kernel(x_ref, w_ref, b_ref, o_ref, acc_ref):
    # x_ref: (TB, TK), w_ref: (TK, TN), b_ref: (1, TN),
    # o_ref: (TB, TN), acc_ref: (TB, TN) f32 accumulator.
    k = pl.program_id(2)

    @pl.when(k == 0)
    def _():
        acc_ref[...] = jnp.zeros_like(acc_ref)

    acc_ref[...] += jnp.dot(
        x_ref[...], w_ref[...], preferred_element_type=jnp.float32
    )

    @pl.when(k == pl.num_programs(2) - 1)
    def _():
        y = acc_ref[...] + b_ref[...].astype(jnp.float32)  # bias broadcast over rows
        o_ref[...] = jnp.maximum(y, 0.0).astype(o_ref.dtype)


def _round_up(x, m):
    return ((x + m - 1) // m) * m


@functools.partial(
    jax.jit, static_argnames=("tile_b", "tile_n", "tile_k", "compute_dtype")
)
def fc_block_forward(x, w, b, *, tile_b=256, tile_n=256, tile_k=512,
                     compute_dtype=None):
    """y = relu(x @ w + b). x:[B,IN], w:[IN,OUT], b:[1,OUT] -> [B,OUT]."""
    B, IN = x.shape
    IN_w, OUT = w.shape
    assert IN == IN_w, "weight must be stored as [in_size, out_size]"
    out_dtype = x.dtype

    # Optional low-precision MXU inputs (f32 accumulation preserved in-kernel).
    if compute_dtype is not None:
        x = x.astype(compute_dtype)
        w = w.astype(compute_dtype)

    # Clamp tiles for small problems while keeping (8, 128) alignment.
    tb = min(tile_b, _round_up(B, 8))
    tn = min(tile_n, _round_up(OUT, 128))
    tk = min(tile_k, _round_up(IN, 128))

    # Pad every dim to a tile multiple (zero padding is exact for matmul+ReLU;
    # padded output columns are sliced off below).
    Bp, INp, OUTp = _round_up(B, tb), _round_up(IN, tk), _round_up(OUT, tn)
    if (Bp, INp) != (B, IN):
        x = jnp.pad(x, ((0, Bp - B), (0, INp - IN)))
    if (INp, OUTp) != (IN, OUT):
        w = jnp.pad(w, ((0, INp - IN), (0, OUTp - OUT)))
    b2 = b.reshape(1, OUT)
    if OUTp != OUT:
        b2 = jnp.pad(b2, ((0, 0), (0, OUTp - OUT)))

    grid = (Bp // tb, OUTp // tn, INp // tk)

    in_itemsize = jnp.dtype(x.dtype).itemsize
    out_itemsize = jnp.dtype(out_dtype).itemsize
    cost = pl.CostEstimate(
        flops=2 * Bp * INp * OUTp,
        transcendentals=0,
        bytes_accessed=(Bp * INp + INp * OUTp + OUTp) * in_itemsize
        + Bp * OUTp * out_itemsize,
    )

    # Per-tile VMEM: double-buffered inputs/outputs + f32 accumulator, with
    # headroom; capped so it stays inside v7x's 64 MiB physical VMEM.
    vmem_bytes = (
        2 * (tb * tk + tk * tn + tn) * in_itemsize
        + 2 * tb * tn * out_itemsize
        + tb * tn * 4
    )
    vmem_limit = int(min(max(vmem_bytes + (4 << 20), 32 << 20), 48 << 20))

    out_padded = pl.pallas_call(
        fc_relu_kernel,
        out_shape=jax.ShapeDtypeStruct((Bp, OUTp), out_dtype),
        grid_spec=pltpu.PrefetchScalarGridSpec(
            num_scalar_prefetch=0,
            grid=grid,
            in_specs=[
                pl.BlockSpec((tb, tk), lambda i, j, k: (i, k)),  # x tile
                pl.BlockSpec((tk, tn), lambda i, j, k: (k, j)),  # weight tile
                pl.BlockSpec((1, tn), lambda i, j, k: (0, j)),   # bias tile
            ],
            out_specs=pl.BlockSpec((tb, tn), lambda i, j, k: (i, j)),
            scratch_shapes=[pltpu.VMEM((tb, tn), jnp.float32)],
        ),
        compiler_params=pltpu.CompilerParams(
            dimension_semantics=("parallel", "parallel", "arbitrary"),
            vmem_limit_bytes=vmem_limit,
        ),
        cost_estimate=cost,
    )(x, w, b2)

    return out_padded[:B, :OUT]


def init_fc_params(key, in_size, out_size, dtype=jnp.float32):
    """Deterministic init mimicking nn.Linear defaults (uniform +-1/sqrt(in))."""
    kw, kb = jax.random.split(key)
    bound = 1.0 / jnp.sqrt(jnp.float32(in_size))
    # PyTorch weight is [out, in]; store transposed [in, out] for the kernel.
    w = jax.random.uniform(kw, (in_size, out_size), dtype, -bound, bound)
    b = jax.random.uniform(kb, (1, out_size), dtype, -bound, bound)
    return w, b


if __name__ == "__main__":
    key = jax.random.PRNGKey(0)
    kx, kp = jax.random.split(key)

    B, IN, OUT = 8, 32, 64
    x = jax.random.normal(kx, (B, IN), jnp.float32)
    w, b = init_fc_params(kp, IN, OUT)

    y_ref = jnp.maximum(x @ w + b, 0.0)

    # f32 path (tight check).
    y = fc_block_forward(x, w, b)
    jax.block_until_ready(y)
    assert y.shape == (B, OUT)
    assert jnp.allclose(y, y_ref, atol=1e-5, rtol=1e-5)

    # bf16 MXU path (v6e/v7x recommendation): f32 accumulation, loose check.
    y_bf16 = fc_block_forward(x, w, b, compute_dtype=jnp.bfloat16)
    jax.block_until_ready(y_bf16)
    assert y_bf16.shape == (B, OUT)
    assert jnp.allclose(y_bf16, y_ref, atol=5e-2, rtol=5e-2)

    print("KERNEL_OK")
</pallas_src>

<mosaic_0001>
module attributes {stable_mosaic.version = 11 : i64} {
  func.func @fc_relu_kernel(%arg0: i32, %arg1: i32, %arg2: i32, %arg3: memref<8x128xf32, #tpu.memory_space<vmem>>, %arg4: memref<128x128xf32, #tpu.memory_space<vmem>>, %arg5: memref<1x128xf32, #tpu.memory_space<vmem>>, %arg6: memref<8x128xf32, #tpu.memory_space<vmem>>, %arg7: memref<8x128xf32, #tpu.memory_space<vmem>>) attributes {dimension_semantics = [#tpu.dimension_semantics<parallel>, #tpu.dimension_semantics<parallel>, #tpu.dimension_semantics<arbitrary>], iteration_bounds = array<i64: 1, 1, 1>, scalar_prefetch = 0 : i64, scratch_operands = 1 : i64, tpu.core_type = #tpu.core_type<tc>, window_params = [{transform_indices = @transform_0, window_bounds = array<i64: 8, 128>}, {transform_indices = @transform_1, window_bounds = array<i64: 128, 128>}, {transform_indices = @transform_2, window_bounds = array<i64: 1, 128>}, {transform_indices = @transform_3, window_bounds = array<i64: 8, 128>}]} {
    %c0_i32 = arith.constant 0 : i32
    %0 = arith.cmpi eq, %arg2, %c0_i32 : i32
    %1 = arith.extui %0 : i1 to i32
    %c0_i32_0 = arith.constant 0 : i32
    %2 = arith.cmpi ne, %1, %c0_i32_0 : i32
    scf.if %2 {
      %cst_10 = arith.constant 0.000000e+00 : f32
      %12 = vector.broadcast %cst_10 : f32 to vector<8x128xf32>
      %c0_11 = arith.constant 0 : index
      %c0_12 = arith.constant 0 : index
      %13 = vector.load %arg7[%c0_11, %c0_12] : memref<8x128xf32, #tpu.memory_space<vmem>>, vector<8x128xf32>
      tpu.vector_store %arg7[%c0_11, %c0_12], %12 {strides = array<i32>} : memref<8x128xf32, #tpu.memory_space<vmem>>, vector<8x128xf32>,
    } else {
    }
    %c0 = arith.constant 0 : index
    %c0_1 = arith.constant 0 : index
    %3 = vector.load %arg7[%c0, %c0_1] : memref<8x128xf32, #tpu.memory_space<vmem>>, vector<8x128xf32>
    %c0_2 = arith.constant 0 : index
    %c0_3 = arith.constant 0 : index
    %4 = vector.load %arg3[%c0_2, %c0_3] : memref<8x128xf32, #tpu.memory_space<vmem>>, vector<8x128xf32>
    %c0_4 = arith.constant 0 : index
    %c0_5 = arith.constant 0 : index
    %5 = vector.load %arg4[%c0_4, %c0_5] : memref<128x128xf32, #tpu.memory_space<vmem>>, vector<128x128xf32>
    %cst = arith.constant dense<0.000000e+00> : vector<8x128xf32>
    %6 = tpu.matmul %4, %5, %cst {dimension_numbers = #tpu.dot_dimension_numbers<[1], [0], [0], [1], [0, 0, 1, 1], [], []>} : vector<8x128xf32>, vector<128x128xf32>, vector<8x128xf32> -> vector<8x128xf32>
    %7 = arith.addf %3, %6 : vector<8x128xf32>
    %c0_6 = arith.constant 0 : index
    %c0_7 = arith.constant 0 : index
    %8 = vector.load %arg7[%c0_6, %c0_7] : memref<8x128xf32, #tpu.memory_space<vmem>>, vector<8x128xf32>
    tpu.vector_store %arg7[%c0_6, %c0_7], %7 {strides = array<i32>} : memref<8x128xf32, #tpu.memory_space<vmem>>, vector<8x128xf32>,
    %c0_i32_8 = arith.constant 0 : i32
    %9 = arith.cmpi eq, %arg2, %c0_i32_8 : i32
    %10 = arith.extui %9 : i1 to i32
    %c0_i32_9 = arith.constant 0 : i32
    %11 = arith.cmpi ne, %10, %c0_i32_9 : i32
    scf.if %11 {
      %c0_10 = arith.constant 0 : index
      %c0_11 = arith.constant 0 : index
      %12 = vector.load %arg7[%c0_10, %c0_11] : memref<8x128xf32, #tpu.memory_space<vmem>>, vector<8x128xf32>
      %c0_12 = arith.constant 0 : index
      %c0_13 = arith.constant 0 : index
      %13 = vector.load %arg5[%c0_12, %c0_13] : memref<1x128xf32, #tpu.memory_space<vmem>>, vector<1x128xf32>
      %14 = vector.broadcast %13 : vector<1x128xf32> to vector<8x128xf32>
      %15 = arith.addf %12, %14 : vector<8x128xf32>
      %cst_14 = arith.constant 0.000000e+00 : f32
      %16 = vector.broadcast %cst_14 : f32 to vector<8x128xf32>
      %17 = arith.maximumf %15, %16 : vector<8x128xf32>
      %c0_15 = arith.constant 0 : index
      %c0_16 = arith.constant 0 : index
      %18 = vector.load %arg6[%c0_15, %c0_16] : memref<8x128xf32, #tpu.memory_space<vmem>>, vector<8x128xf32>
      tpu.vector_store %arg6[%c0_15, %c0_16], %17 {strides = array<i32>} : memref<8x128xf32, #tpu.memory_space<vmem>>, vector<8x128xf32>,
    } else {
    }
    return
  }
  func.func @transform_0(%arg0: i32, %arg1: i32, %arg2: i32) -> (i32, i32) {
    %c0_i32 = arith.constant 0 : i32
    return %arg0, %arg2 : i32, i32
  }
  func.func @transform_1(%arg0: i32, %arg1: i32, %arg2: i32) -> (i32, i32) {
    %c0_i32 = arith.constant 0 : i32
    return %arg2, %arg1 : i32, i32
  }
  func.func @transform_2(%arg0: i32, %arg1: i32, %arg2: i32) -> (i32, i32) {
    %c0_i32 = arith.constant 0 : i32
    %c0_i32_0 = arith.constant 0 : i32
    return %c0_i32, %arg1 : i32, i32
  }
  func.func @transform_3(%arg0: i32, %arg1: i32, %arg2: i32) -> (i32, i32) {
    %c0_i32 = arith.constant 0 : i32
    return %arg0, %arg1 : i32, i32
  }
}

</mosaic_0001>

<llo_original>
// kernel: fc_block_forward.1
$region0: #{fc_block_forward.1}
  #allocation0 [shape = 'u32[]', space=smem, size = 0x4, offset = 0x4, fixed_abs, tag = 'smem constant byte address 0x4 - core index']
  #allocation1 [shape = 'u32[72,128]{1,0:T(1,128)}', space=vmem, size = 0x9000, scoped, tag = 'internal scratch']
  #allocation2 [shape = 'f32[8,128]{1,0:T(8,128)}', space=vmem, size = 0x1000, scoped, tag = 'scratch operand']
  %s0 = inlined_call_operand.vmem [shape: f32[8,128], index: 0, kind: input, shape index: {}]
  %s1 = inlined_call_operand.vmem [shape: f32[128,128], index: 1, kind: input, shape index: {}]
  %s2 = inlined_call_operand.vmem [shape: f32[1,128], index: 2, kind: input, shape index: {}]
  %s3 = inlined_call_operand.hbm [shape: f32[8,128], index: 3, kind: output, shape index: {}]
  %s4 = sld [smem:[#allocation0]]
  $region30: #{fc_block_forward.1} parent=0
    _
  %s6 = ssub.s32 1, %s4
  %s7 = scalar_select 0, %s6, %s4
  $region1: #{fc_block_forward.1} parent=0
    #allocation3 [shape = 'u8[4096]{0}', space=vmem, size = 0x1000, scoped, tag = 'output window, operand 0, single buffered']
    #allocation4 [shape = 's32[1]{0}', space=sflag, size = 0x4, scoped, tag = 'scoped memory for fc_block_forward.1']
    %8 = vsyncpa [#allocation4], 0
    // Predicated region
    $region2: #{fc_block_forward.1} parent=1 // pred_check
      _
    $region3: #{fc_block_forward.1} parent=1 // pred_check_branch
      %10 = sbr.rel (0) target = $region5
    $region4: #{fc_block_forward.1} parent=1 // pred_region
      _
    $region5: #{fc_block_forward.1} parent=1 // pred_fallthru
      _
    // Predicated region
    $region6: #{fc_block_forward.1} parent=1 // pred_check
      _
    $region7: #{fc_block_forward.1} parent=1 // pred_check_branch
      %12 = sbr.rel (0) target = $region9
    $region8: #{fc_block_forward.1} parent=1 // pred_region
      _
    $region9: #{fc_block_forward.1} parent=1 // pred_fallthru
      _
    // Predicated region
    $region10: #{fc_block_forward.1} parent=1 // pred_check
      _
    $region11: #{fc_block_forward.1} parent=1 // pred_check_branch
      %14 = sbr.rel (0) target = $region13
    $region12: #{fc_block_forward.1} parent=1 // pred_region
      _
    $region13: #{fc_block_forward.1} parent=1 // pred_fallthru
      _
    %p15 = scmp.eq.s32.totalorder 0, 0
    // Predicated region
    $region14: #{fc_block_forward.1} parent=1 // pred_check
      %p16 = pneg %p15
    $region15: #{fc_block_forward.1} parent=1 // pred_check_branch
      %18 = sbr.rel (%p16) target = $region17
    $region16: #{fc_block_forward.1} parent=1 // pred_region
      %19 = vst [vmem:[#allocation2] sm:$0xff] 0.0
    $region17: #{fc_block_forward.1} parent=1 // pred_fallthru
      _
    %v20 = vld [vmem:[#allocation2] sm:$0xff]
    %v21 = vld [vmem:[%s0] sm:$0xff]
    %v22 = vld [vmem:[%s1] sm:$0xff]
    %v23 = vld [vmem:[%s1 + $0x8] sm:$0xff]
    %v24 = vld [vmem:[%s1 + $0x10] sm:$0xff]
    %v25 = vld [vmem:[%s1 + $0x18] sm:$0xff]
    %v26 = vld [vmem:[%s1 + $0x20] sm:$0xff]
    %v27 = vld [vmem:[%s1 + $0x28] sm:$0xff]
    %v28 = vld [vmem:[%s1 + $0x30] sm:$0xff]
    %v29 = vld [vmem:[%s1 + $0x38] sm:$0xff]
    %v30 = vld [vmem:[%s1 + $0x40] sm:$0xff]
    %v31 = vld [vmem:[%s1 + $0x48] sm:$0xff]
    %v32 = vld [vmem:[%s1 + $0x50] sm:$0xff]
    %v33 = vld [vmem:[%s1 + $0x58] sm:$0xff]
    %v34 = vld [vmem:[%s1 + $0x60] sm:$0xff]
    %v35 = vld [vmem:[%s1 + $0x68] sm:$0xff]
    %v36 = vld [vmem:[%s1 + $0x70] sm:$0xff]
    %v37 = vld [vmem:[%s1 + $0x78] sm:$0xff]
    %38 = vmatpush.msra.mxu0 %v37
    %39 = vmatpush.msra.mxu0 %v36
    %40 = vmatpush.msra.mxu0 %v35
    %41 = vmatpush.msra.mxu0 %v34
    %42 = vmatpush.msra.mxu0 %v33
    %43 = vmatpush.msra.mxu0 %v32
    %44 = vmatpush.msra.mxu0 %v31
    %45 = vmatpush.msra.mxu0 %v30
    %46 = vmatpush.msra.mxu0 %v29
    %47 = vmatpush.msra.mxu0 %v28
    %48 = vmatpush.msra.mxu0 %v27
    %49 = vmatpush.msra.mxu0 %v26
    %50 = vmatpush.msra.mxu0 %v25
    %51 = vmatpush.msra.mxu0 %v24
    %52 = vmatpush.msra.mxu0 %v23
    %53 = vmatpush.msra.mxu0 %v22
    %54 = vmatmul.f32.gmra.mxu0 %v21
    %v55 = vpop.f32.mrf.mxu0
    %v56 = vadd.f32 0.0, %v55
    %57 = vdwg.mxu0
    %v58 = vadd.f32 %v20, %v56
    %59 = vst [vmem:[#allocation2] sm:$0xff] %v58
    // Predicated region
    $region18: #{fc_block_forward.1} parent=1 // pred_check
      %p60 = pneg %p15
    $region19: #{fc_block_forward.1} parent=1 // pred_check_branch
      %62 = sbr.rel (%p60) target = $region21
    $region20: #{fc_block_forward.1} parent=1 // pred_region
      %v63 = vld [vmem:[#allocation2] sm:$0xff]
      %v64 = vld [vmem:[%s2] sm:$0x1]
      %v66 = vperm.slane %v64, 0
      %v68 = vadd.f32 %v63, %v66
      %v69 = vmax.f32 %v68, 0.0
      %70 = vst [vmem:[#allocation3] sm:$0xff] %v69
    $region21: #{fc_block_forward.1} parent=1 // pred_fallthru
      _
    // Predicated region
    $region22: #{fc_block_forward.1} parent=1 // pred_check
      _
    $region23: #{fc_block_forward.1} parent=1 // pred_check_branch
      %72 = sbr.rel (0) target = $region25
    $region24: #{fc_block_forward.1} parent=1 // pred_region
      %74 = vsyncadd [#allocation4], 0
      %s76 = sshll.u32 [#allocation3], 4
      %s77 = int_to_ptr.vmem [resolvable:$true] %s76
      %s78 = sshll.u32 %s3, 4
      %s79 = int_to_ptr.hbm [resolvable:$true] %s78
      %81 = dma.vmem_to_hbm [thread:$0]  %s77, 128, %s79, [#allocation4]
    $region25: #{fc_block_forward.1} parent=1 // pred_fallthru
      _
    // Predicated region
    $region26: #{fc_block_forward.1} parent=1 // pred_check
      _
    $region27: #{fc_block_forward.1} parent=1 // pred_check_branch
      %83 = sbr.rel (0) target = $region29
    $region28: #{fc_block_forward.1} parent=1 // pred_region
      %85 = dma.done [#allocation4], 128
    $region29: #{fc_block_forward.1} parent=1 // pred_fallthru
      _
    %86 = vsyncpa [#allocation4], 1

</llo_original>
